<compile_context>
chip_gen: v7x
topology: tpu7x:2x2x1
jax: 0.10.0
libtpu: 0.0.40
codegen_flags: <defaults>
</compile_context>

<pallas_src>
import jax
import jax.numpy as jnp
from jax.experimental import pallas as pl
from jax.experimental.pallas import tpu as pltpu

_MIB = 1024 * 1024


def _dense(x, w_ref, b_ref, *, relu=True, out_dtype=jnp.float32):
    """x @ W + b: MXU operands in W's dtype, f32 accumulation, f32 bias/ReLU,
    result narrowed to `out_dtype` (bf16 for matmul-only intermediates)."""
    y = jnp.dot(x.astype(w_ref.dtype), w_ref[...],
                preferred_element_type=jnp.float32) + b_ref[...]
    if relu:
        y = jnp.maximum(y, 0.0)
    return y.astype(out_dtype)


def sliding_ff_kernel(x_ref, win0_ref,
                      w1, b1, w2, b2, w3, b3, w4, b4, w5, b5,
                      q_ref, win_ref, pad_ref):
    """Per B-tile body.

    x_ref   : (ts, bt, obs)        time-major rows for this tile (f32)
    win0_ref: (W-1, bt, D)         initial window, chunk-major (f32)
    w3      : (W*D, O)             full fc3 weight (compute dtype)
    q_ref   : (ts, bt, A)          f32 output
    win_ref : (W-1, bt, D)         final window, chunk-major (f32)
    pad_ref : ((W-1+ts)*bt, D)     VMEM scratch (compute dtype); row block k
                                   holds chunk k of [win_0..win_{W-2}, h2_*]
    """
    ts, bt, obs = x_ref.shape
    wm1, _, d = win0_ref.shape           # W-1, bt, D
    n_win = wm1 + 1                      # W
    m = ts * bt
    cdt = w1.dtype                       # MXU-operand / intermediate dtype

    # ---- fc1 / fc2 over all timesteps at once (big-M matmuls) --------------
    x = x_ref[...].reshape(m, obs)
    h1 = _dense(x, w1, b1, out_dtype=cdt)                   # (m, H)  bf16
    h2 = _dense(h1, w2, b2)                                 # (m, D)  f32

    # ---- final window = last (W-1) chunks of [win0 ; h2], exact f32 --------
    if ts >= wm1:
        win_out = h2[(ts - wm1) * bt:]
    else:  # window still partially covered by the initial window
        win_out = jnp.concatenate(
            [win0_ref[...].reshape(wm1 * bt, d)[ts * bt:], h2], axis=0)
    win_ref[...] = win_out.reshape(wm1, bt, d).astype(win_ref.dtype)

    # ---- padded sequence in VMEM scratch; single cast to compute dtype -----
    pad_ref[0:wm1 * bt, :] = win0_ref[...].reshape(wm1 * bt, d).astype(cdt)
    pad_ref[wm1 * bt:, :] = h2.astype(cdt)

    # ---- fc3: unfold the W shifted chunks along lanes -> one K=W*D matmul --
    #      unf[t*bt + b, j*D:(j+1)*D] = chunk (t+j) of [win0 ; h2]
    unf = jnp.concatenate(
        [pad_ref[j * bt:j * bt + m, :] for j in range(n_win)], axis=-1)
    h3 = _dense(unf, w3, b3, out_dtype=cdt)                 # (m, O)  bf16

    # ---- fc4 / fc5; single store of the whole q block -----------------------
    h4 = _dense(h3, w4, b4, out_dtype=cdt)                  # (m, DH) bf16
    q = _dense(h4, w5, b5, relu=False)                      # (m, A)  f32
    q_ref[...] = q.reshape(ts, bt, -1).astype(q_ref.dtype)


# --------------------------- tiling / VMEM sizing ----------------------------

def _tpu_kind():
    try:
        return jax.devices()[0].device_kind.lower()
    except Exception:
        return ""


def _num_tensorcores():
    """v7x exposes 2 TensorCores per chip; v5e/v6e have 1."""
    return 2 if "v7" in _tpu_kind() else 1


def _vmem_budget_bytes():
    """Stay under v7x's 64 MiB physical VMEM; v5e/v6e have 128 MiB."""
    return 48 * _MIB if "v7" in _tpu_kind() else 96 * _MIB


def _lane_pad(n):
    return max(-(-n // 128) * 128, 128)


def _vmem_estimate_bytes(block_b, ts, obs, H, D, W, O, DH, A, cbytes):
    """Rough lane-PADDED per-step VMEM footprint (I/O tiles double-buffered,
    pad scratch, live activation slabs, weights)."""
    m = ts * block_b
    wm1 = W - 1
    io = 2 * 4 * (ts * block_b * _lane_pad(obs)             # x
                  + 2 * wm1 * block_b * _lane_pad(D)        # win0 + win out
                  + ts * block_b * _lane_pad(A))            # q out
    scratch = cbytes * (wm1 + ts) * block_b * _lane_pad(D)
    acts = m * (cbytes * (_lane_pad(H) + _lane_pad(W * D)
                          + _lane_pad(O) + _lane_pad(DH))
                + 4 * (_lane_pad(obs) + _lane_pad(D) + _lane_pad(A)))
    weights = 4 * (obs * _lane_pad(H) + H * _lane_pad(D) + W * D * _lane_pad(O)
                   + O * _lane_pad(DH) + DH * _lane_pad(A))
    return io + scratch + acts + weights


def _pick_block_b(B, *, n_cores, fits):
    """Largest multiple-of-8 divisor of B that fits the VMEM budget; if
    possible, also yields >= n_cores grid steps (v7x megacore)."""
    if B % 8 != 0:
        return B                       # awkward B: single full tile (legal)
    divs = sorted((d for d in range(8, B + 1, 8) if B % d == 0), reverse=True)
    best = divs[-1]
    for d in divs:
        if fits(d):
            best = d
            break
    if n_cores > 1 and B // best < n_cores:
        for d in divs:
            if B // d >= n_cores and fits(d):
                return d
    return best


# --------------------------------- wrapper -----------------------------------

def sliding_ff_agent(inputs, hidden_state, params, sw_input_dim,
                     sw_window_size, *, compute_dtype=jnp.bfloat16,
                     block_b=None):
    """inputs: (bs, ts, na, obs); hidden_state: (bs, na, (W-1)*D).

    Returns q: (bs, ts, na, n_actions) and window: (bs, na, (W-1)*D),
    matching the PyTorch module's forward semantics.
    """
    bs, ts, na, obs = inputs.shape
    B = bs * na
    D = sw_input_dim
    W = sw_window_size
    H = params["w1"].shape[1]
    O = params["w3"].shape[1]
    DH = params["w4"].shape[1]
    A = params["w5"].shape[1]
    win_dim = (W - 1) * D
    cbytes = jnp.dtype(compute_dtype).itemsize

    budget = _vmem_budget_bytes()
    if block_b is None:
        fits = lambda bb: _vmem_estimate_bytes(
            bb, ts, obs, H, D, W, O, DH, A, cbytes) <= int(0.8 * budget)
        block_b = _pick_block_b(B, n_cores=_num_tensorcores(), fits=fits)
    assert B % block_b == 0, "block_b must divide bs*na"

    est = _vmem_estimate_bytes(block_b, ts, obs, H, D, W, O, DH, A, cbytes)
    cp_kwargs = dict(dimension_semantics=("parallel",))
    if est > 12 * _MIB:      # above the most conservative default scoped limit
        cp_kwargs["vmem_limit_bytes"] = int(min(max(2 * est, 32 * _MIB), budget))

    # Time-major rows for x; chunk-major initial window (W-1, B, D).
    # TODO(synk): the wrapper-side (bs,ts)<->(ts,bs) transposes of x/q could be
    # folded into the kernel with an in-VMEM reorder (review item 8).
    x = jnp.transpose(inputs, (1, 0, 2, 3)).reshape(ts, B, obs)
    win0 = jnp.transpose(hidden_state.reshape(B, W - 1, D), (1, 0, 2))
    win0 = win0.astype(jnp.float32)

    # Weights in compute dtype (bf16 on v6e/v7x); biases stay f32.
    flat = [
        params["w1"].astype(compute_dtype), params["b1"].astype(jnp.float32),
        params["w2"].astype(compute_dtype), params["b2"].astype(jnp.float32),
        params["w3"].astype(compute_dtype), params["b3"].astype(jnp.float32),
        params["w4"].astype(compute_dtype), params["b4"].astype(jnp.float32),
        params["w5"].astype(compute_dtype), params["b5"].astype(jnp.float32),
    ]

    def const_spec(a):
        return pl.BlockSpec(a.shape, lambda i, nd=a.ndim: (0,) * nd)

    grid = (B // block_b,)

    q_flat, win = pl.pallas_call(
        sliding_ff_kernel,
        out_shape=(jax.ShapeDtypeStruct((ts, B, A), jnp.float32),
                   jax.ShapeDtypeStruct((W - 1, B, D), jnp.float32)),
        grid=grid,
        in_specs=[pl.BlockSpec((ts, block_b, obs), lambda i: (0, i, 0)),
                  pl.BlockSpec((W - 1, block_b, D), lambda i: (0, i, 0))]
                 + [const_spec(a) for a in flat],
        out_specs=(pl.BlockSpec((ts, block_b, A), lambda i: (0, i, 0)),
                   pl.BlockSpec((W - 1, block_b, D), lambda i: (0, i, 0))),
        scratch_shapes=[pltpu.VMEM(((W - 1 + ts) * block_b, D), compute_dtype)],
        compiler_params=pltpu.CompilerParams(**cp_kwargs),
    )(x, win0, *flat)

    q = jnp.transpose(q_flat.reshape(ts, bs, na, A), (1, 0, 2, 3))
    window = jnp.transpose(win, (1, 0, 2)).reshape(bs, na, win_dim)
    return q, window


# -------------------------------- reference ----------------------------------

def reference(inputs, hidden_state, params, sw_input_dim, sw_window_size):
    """Pure-JAX replica of the PyTorch forward, for correctness checking."""
    bs, ts, na, _ = inputs.shape
    D = sw_input_dim

    def lin(x, w, b):
        return x @ w + b

    x = jax.nn.relu(lin(inputs, params["w1"], params["b1"]))
    x = jax.nn.relu(lin(x, params["w2"], params["b2"]))
    window = hidden_state.reshape(bs, na, -1)
    outs = []
    for t in range(ts):
        curr = jnp.concatenate([window, x[:, t]], axis=2)
        outs.append(jax.nn.relu(lin(curr, params["w3"], params["b3"])))
        window = curr[:, :, -(sw_window_size - 1) * D:]
    xs = jnp.stack(outs, axis=1)
    xs = jax.nn.relu(lin(xs, params["w4"], params["b4"]))
    q = lin(xs, params["w5"], params["b5"])
    return q, window


if __name__ == "__main__":
    # args: input_shape=16, sw_hidden_dim=32, sw_input_dim=16, sw_window_size=4,
    #       sw_output_dim=32, sw_decoder_hidden_layer=32, n_actions=8
    bs, ts, na, obs = 2, 8, 4, 16
    H, D, W, O, DH, A = 32, 16, 4, 32, 32, 8

    key = jax.random.PRNGKey(0)
    keys = jax.random.split(key, 12)

    def init(k, shape, scale=0.1):
        return (scale * jax.random.normal(k, shape)).astype(jnp.float32)

    params = {
        "w1": init(keys[0], (obs, H)),   "b1": init(keys[1], (1, H)),
        "w2": init(keys[2], (H, D)),     "b2": init(keys[3], (1, D)),
        "w3": init(keys[4], (W * D, O)), "b3": init(keys[5], (1, O)),
        "w4": init(keys[6], (O, DH)),    "b4": init(keys[7], (1, DH)),
        "w5": init(keys[8], (DH, A)),    "b5": init(keys[9], (1, A)),
    }

    inputs = jax.random.normal(keys[10], (bs, ts, na, obs), dtype=jnp.float32)
    hidden = jax.random.normal(keys[11], (bs, na, (W - 1) * D), dtype=jnp.float32)

    q_ref, win_ref = reference(inputs, hidden, params, D, W)

    # f32-operand path: validates the structural rewrite tightly.
    q32, win32 = sliding_ff_agent(inputs, hidden, params, D, W,
                                  compute_dtype=jnp.float32)
    jax.block_until_ready((q32, win32))
    assert q32.shape == (bs, ts, na, A) and win32.shape == (bs, na, (W - 1) * D)
    assert jnp.allclose(q32, q_ref, atol=1e-2, rtol=1e-2), "q mismatch (f32 path)"
    assert jnp.allclose(win32, win_ref, atol=1e-2, rtol=1e-2), "window mismatch (f32 path)"

    # Default bf16-operand path (f32 accumulation): looser tolerance.
    q16, win16 = sliding_ff_agent(inputs, hidden, params, D, W)
    jax.block_until_ready((q16, win16))
    assert q16.shape == (bs, ts, na, A) and win16.shape == (bs, na, (W - 1) * D)
    assert jnp.allclose(q16, q_ref, atol=3e-2, rtol=3e-2), "q mismatch (bf16 path)"
    assert jnp.allclose(win16, win_ref, atol=3e-2, rtol=3e-2), "window mismatch (bf16 path)"

    print("KERNEL_OK")
</pallas_src>

<mosaic_0001>
module attributes {stable_mosaic.version = 11 : i64} {
  func.func @sliding_ff_kernel(%arg0: i32, %arg1: memref<8x8x16xf32, #tpu.memory_space<vmem>>, %arg2: memref<3x8x16xf32, #tpu.memory_space<vmem>>, %arg3: memref<16x32xf32, #tpu.memory_space<vmem>>, %arg4: memref<1x32xf32, #tpu.memory_space<vmem>>, %arg5: memref<32x16xf32, #tpu.memory_space<vmem>>, %arg6: memref<1x16xf32, #tpu.memory_space<vmem>>, %arg7: memref<64x32xf32, #tpu.memory_space<vmem>>, %arg8: memref<1x32xf32, #tpu.memory_space<vmem>>, %arg9: memref<32x32xf32, #tpu.memory_space<vmem>>, %arg10: memref<1x32xf32, #tpu.memory_space<vmem>>, %arg11: memref<32x8xf32, #tpu.memory_space<vmem>>, %arg12: memref<1x8xf32, #tpu.memory_space<vmem>>, %arg13: memref<8x8x8xf32, #tpu.memory_space<vmem>>, %arg14: memref<3x8x16xf32, #tpu.memory_space<vmem>>, %arg15: memref<88x16xf32, #tpu.memory_space<vmem>>) attributes {dimension_semantics = [#tpu.dimension_semantics<parallel>], iteration_bounds = array<i64: 1>, scalar_prefetch = 0 : i64, scratch_operands = 1 : i64, tpu.core_type = #tpu.core_type<tc>, window_params = [{transform_indices = @transform_0, window_bounds = array<i64: 8, 8, 16>}, {transform_indices = @transform_1, window_bounds = array<i64: 3, 8, 16>}, {pipeline_mode = #tpu.pipeline_mode<synchronous>, transform_indices = @transform_2, window_bounds = array<i64: 16, 32>}, {pipeline_mode = #tpu.pipeline_mode<synchronous>, transform_indices = @transform_3, window_bounds = array<i64: 1, 32>}, {pipeline_mode = #tpu.pipeline_mode<synchronous>, transform_indices = @transform_4, window_bounds = array<i64: 32, 16>}, {pipeline_mode = #tpu.pipeline_mode<synchronous>, transform_indices = @transform_5, window_bounds = array<i64: 1, 16>}, {pipeline_mode = #tpu.pipeline_mode<synchronous>, transform_indices = @transform_6, window_bounds = array<i64: 64, 32>}, {pipeline_mode = #tpu.pipeline_mode<synchronous>, transform_indices = @transform_7, window_bounds = array<i64: 1, 32>}, {pipeline_mode = #tpu.pipeline_mode<synchronous>, transform_indices = @transform_8, window_bounds = array<i64: 32, 32>}, {pipeline_mode = #tpu.pipeline_mode<synchronous>, transform_indices = @transform_9, window_bounds = array<i64: 1, 32>}, {pipeline_mode = #tpu.pipeline_mode<synchronous>, transform_indices = @transform_10, window_bounds = array<i64: 32, 8>}, {pipeline_mode = #tpu.pipeline_mode<synchronous>, transform_indices = @transform_11, window_bounds = array<i64: 1, 8>}, {transform_indices = @transform_12, window_bounds = array<i64: 8, 8, 8>}, {transform_indices = @transform_13, window_bounds = array<i64: 3, 8, 16>}]} {
    %c0 = arith.constant 0 : index
    %c0_0 = arith.constant 0 : index
    %c0_1 = arith.constant 0 : index
    %0 = vector.load %arg1[%c0, %c0_0, %c0_1] : memref<8x8x16xf32, #tpu.memory_space<vmem>>, vector<8x8x16xf32>
    %1 = vector.shape_cast %0 : vector<8x8x16xf32> to vector<64x16xf32>
    %c0_2 = arith.constant 0 : index
    %c0_3 = arith.constant 0 : index
    %2 = vector.load %arg3[%c0_2, %c0_3] : memref<16x32xf32, #tpu.memory_space<vmem>>, vector<16x32xf32>
    %cst = arith.constant dense<0.000000e+00> : vector<64x32xf32>
    %3 = tpu.matmul %1, %2, %cst {dimension_numbers = #tpu.dot_dimension_numbers<[1], [0], [0], [1], [0, 0, 1, 1], [], []>} : vector<64x16xf32>, vector<16x32xf32>, vector<64x32xf32> -> vector<64x32xf32>
    %c0_4 = arith.constant 0 : index
    %c0_5 = arith.constant 0 : index
    %4 = vector.load %arg4[%c0_4, %c0_5] : memref<1x32xf32, #tpu.memory_space<vmem>>, vector<1x32xf32>
    %5 = vector.broadcast %4 : vector<1x32xf32> to vector<64x32xf32>
    %6 = arith.addf %3, %5 : vector<64x32xf32>
    %cst_6 = arith.constant 0.000000e+00 : f32
    %7 = vector.broadcast %cst_6 : f32 to vector<64x32xf32>
    %8 = arith.maximumf %6, %7 : vector<64x32xf32>
    %c0_7 = arith.constant 0 : index
    %c0_8 = arith.constant 0 : index
    %9 = vector.load %arg5[%c0_7, %c0_8] : memref<32x16xf32, #tpu.memory_space<vmem>>, vector<32x16xf32>
    %cst_9 = arith.constant dense<0.000000e+00> : vector<64x16xf32>
    %10 = tpu.matmul %8, %9, %cst_9 {dimension_numbers = #tpu.dot_dimension_numbers<[1], [0], [0], [1], [0, 0, 1, 1], [], []>} : vector<64x32xf32>, vector<32x16xf32>, vector<64x16xf32> -> vector<64x16xf32>
    %c0_10 = arith.constant 0 : index
    %c0_11 = arith.constant 0 : index
    %11 = vector.load %arg6[%c0_10, %c0_11] : memref<1x16xf32, #tpu.memory_space<vmem>>, vector<1x16xf32>
    %12 = vector.broadcast %11 : vector<1x16xf32> to vector<64x16xf32>
    %13 = arith.addf %10, %12 : vector<64x16xf32>
    %cst_12 = arith.constant 0.000000e+00 : f32
    %14 = vector.broadcast %cst_12 : f32 to vector<64x16xf32>
    %15 = arith.maximumf %13, %14 : vector<64x16xf32>
    %16 = vector.extract_strided_slice %15 {offsets = [40, 0], sizes = [24, 16], strides = [1, 1]} : vector<64x16xf32> to vector<24x16xf32>
    %17 = vector.shape_cast %16 : vector<24x16xf32> to vector<3x8x16xf32>
    %c0_13 = arith.constant 0 : index
    %c0_14 = arith.constant 0 : index
    %c0_15 = arith.constant 0 : index
    %18 = vector.load %arg14[%c0_13, %c0_14, %c0_15] : memref<3x8x16xf32, #tpu.memory_space<vmem>>, vector<3x8x16xf32>
    tpu.vector_store %arg14[%c0_13, %c0_14, %c0_15], %17 {strides = array<i32>} : memref<3x8x16xf32, #tpu.memory_space<vmem>>, vector<3x8x16xf32>,
    %c0_16 = arith.constant 0 : index
    %c0_17 = arith.constant 0 : index
    %c0_18 = arith.constant 0 : index
    %19 = vector.load %arg2[%c0_16, %c0_17, %c0_18] : memref<3x8x16xf32, #tpu.memory_space<vmem>>, vector<3x8x16xf32>
    %20 = vector.shape_cast %19 : vector<3x8x16xf32> to vector<24x16xf32>
    %c0_19 = arith.constant 0 : index
    %c0_20 = arith.constant 0 : index
    %21 = vector.load %arg15[%c0_19, %c0_20] : memref<88x16xf32, #tpu.memory_space<vmem>>, vector<24x16xf32>
    tpu.vector_store %arg15[%c0_19, %c0_20], %20 {strides = array<i32>} : memref<88x16xf32, #tpu.memory_space<vmem>>, vector<24x16xf32>,
    %c24 = arith.constant 24 : index
    %c0_21 = arith.constant 0 : index
    %22 = vector.load %arg15[%c24, %c0_21] : memref<88x16xf32, #tpu.memory_space<vmem>>, vector<64x16xf32>
    tpu.vector_store %arg15[%c24, %c0_21], %15 {strides = array<i32>} : memref<88x16xf32, #tpu.memory_space<vmem>>, vector<64x16xf32>,
    %c0_22 = arith.constant 0 : index
    %c0_23 = arith.constant 0 : index
    %23 = vector.load %arg15[%c0_22, %c0_23] : memref<88x16xf32, #tpu.memory_space<vmem>>, vector<64x16xf32>
    %c8 = arith.constant 8 : index
    %c0_24 = arith.constant 0 : index
    %24 = vector.load %arg15[%c8, %c0_24] : memref<88x16xf32, #tpu.memory_space<vmem>>, vector<64x16xf32>
    %c16 = arith.constant 16 : index
    %c0_25 = arith.constant 0 : index
    %25 = vector.load %arg15[%c16, %c0_25] : memref<88x16xf32, #tpu.memory_space<vmem>>, vector<64x16xf32>
    %c24_26 = arith.constant 24 : index
    %c0_27 = arith.constant 0 : index
    %26 = vector.load %arg15[%c24_26, %c0_27] : memref<88x16xf32, #tpu.memory_space<vmem>>, vector<64x16xf32>
    %27 = tpu.concatenate %23, %24, %25, %26 in 1 : vector<64x16xf32>, vector<64x16xf32>, vector<64x16xf32>, vector<64x16xf32> -> vector<64x64xf32>
    %c0_28 = arith.constant 0 : index
    %c0_29 = arith.constant 0 : index
    %28 = vector.load %arg7[%c0_28, %c0_29] : memref<64x32xf32, #tpu.memory_space<vmem>>, vector<64x32xf32>
    %cst_30 = arith.constant dense<0.000000e+00> : vector<64x32xf32>
    %29 = tpu.matmul %27, %28, %cst_30 {dimension_numbers = #tpu.dot_dimension_numbers<[1], [0], [0], [1], [0, 0, 1, 1], [], []>} : vector<64x64xf32>, vector<64x32xf32>, vector<64x32xf32> -> vector<64x32xf32>
    %c0_31 = arith.constant 0 : index
    %c0_32 = arith.constant 0 : index
    %30 = vector.load %arg8[%c0_31, %c0_32] : memref<1x32xf32, #tpu.memory_space<vmem>>, vector<1x32xf32>
    %31 = vector.broadcast %30 : vector<1x32xf32> to vector<64x32xf32>
    %32 = arith.addf %29, %31 : vector<64x32xf32>
    %cst_33 = arith.constant 0.000000e+00 : f32
    %33 = vector.broadcast %cst_33 : f32 to vector<64x32xf32>
    %34 = arith.maximumf %32, %33 : vector<64x32xf32>
    %c0_34 = arith.constant 0 : index
    %c0_35 = arith.constant 0 : index
    %35 = vector.load %arg9[%c0_34, %c0_35] : memref<32x32xf32, #tpu.memory_space<vmem>>, vector<32x32xf32>
    %cst_36 = arith.constant dense<0.000000e+00> : vector<64x32xf32>
    %36 = tpu.matmul %34, %35, %cst_36 {dimension_numbers = #tpu.dot_dimension_numbers<[1], [0], [0], [1], [0, 0, 1, 1], [], []>} : vector<64x32xf32>, vector<32x32xf32>, vector<64x32xf32> -> vector<64x32xf32>
    %c0_37 = arith.constant 0 : index
    %c0_38 = arith.constant 0 : index
    %37 = vector.load %arg10[%c0_37, %c0_38] : memref<1x32xf32, #tpu.memory_space<vmem>>, vector<1x32xf32>
    %38 = vector.broadcast %37 : vector<1x32xf32> to vector<64x32xf32>
    %39 = arith.addf %36, %38 : vector<64x32xf32>
    %cst_39 = arith.constant 0.000000e+00 : f32
    %40 = vector.broadcast %cst_39 : f32 to vector<64x32xf32>
    %41 = arith.maximumf %39, %40 : vector<64x32xf32>
    %c0_40 = arith.constant 0 : index
    %c0_41 = arith.constant 0 : index
    %42 = vector.load %arg11[%c0_40, %c0_41] : memref<32x8xf32, #tpu.memory_space<vmem>>, vector<32x8xf32>
    %cst_42 = arith.constant dense<0.000000e+00> : vector<64x8xf32>
    %43 = tpu.matmul %41, %42, %cst_42 {dimension_numbers = #tpu.dot_dimension_numbers<[1], [0], [0], [1], [0, 0, 1, 1], [], []>} : vector<64x32xf32>, vector<32x8xf32>, vector<64x8xf32> -> vector<64x8xf32>
    %c0_43 = arith.constant 0 : index
    %c0_44 = arith.constant 0 : index
    %44 = vector.load %arg12[%c0_43, %c0_44] : memref<1x8xf32, #tpu.memory_space<vmem>>, vector<1x8xf32>
    %45 = vector.broadcast %44 : vector<1x8xf32> to vector<64x8xf32>
    %46 = arith.addf %43, %45 : vector<64x8xf32>
    %47 = vector.shape_cast %46 : vector<64x8xf32> to vector<8x8x8xf32>
    %c0_45 = arith.constant 0 : index
    %c0_46 = arith.constant 0 : index
    %c0_47 = arith.constant 0 : index
    %48 = vector.load %arg13[%c0_45, %c0_46, %c0_47] : memref<8x8x8xf32, #tpu.memory_space<vmem>>, vector<8x8x8xf32>
    tpu.vector_store %arg13[%c0_45, %c0_46, %c0_47], %47 {strides = array<i32>} : memref<8x8x8xf32, #tpu.memory_space<vmem>>, vector<8x8x8xf32>,
    return
  }
  func.func @transform_0(%arg0: i32) -> (i32, i32, i32) {
    %c0_i32 = arith.constant 0 : i32
    %c0_i32_0 = arith.constant 0 : i32
    %c0_i32_1 = arith.constant 0 : i32
    return %c0_i32, %arg0, %c0_i32_0 : i32, i32, i32
  }
  func.func @transform_1(%arg0: i32) -> (i32, i32, i32) {
    %c0_i32 = arith.constant 0 : i32
    %c0_i32_0 = arith.constant 0 : i32
    %c0_i32_1 = arith.constant 0 : i32
    return %c0_i32, %arg0, %c0_i32_0 : i32, i32, i32
  }
  func.func @transform_2(%arg0: i32) -> (i32, i32) {
    %c0_i32 = arith.constant 0 : i32
    %c0_i32_0 = arith.constant 0 : i32
    %c0_i32_1 = arith.constant 0 : i32
    return %c0_i32, %c0_i32_0 : i32, i32
  }
  func.func @transform_3(%arg0: i32) -> (i32, i32) {
    %c0_i32 = arith.constant 0 : i32
    %c0_i32_0 = arith.constant 0 : i32
    %c0_i32_1 = arith.constant 0 : i32
    return %c0_i32, %c0_i32_0 : i32, i32
  }
  func.func @transform_4(%arg0: i32) -> (i32, i32) {
    %c0_i32 = arith.constant 0 : i32
    %c0_i32_0 = arith.constant 0 : i32
    %c0_i32_1 = arith.constant 0 : i32
    return %c0_i32, %c0_i32_0 : i32, i32
  }
  func.func @transform_5(%arg0: i32) -> (i32, i32) {
    %c0_i32 = arith.constant 0 : i32
    %c0_i32_0 = arith.constant 0 : i32
    %c0_i32_1 = arith.constant 0 : i32
    return %c0_i32, %c0_i32_0 : i32, i32
  }
  func.func @transform_6(%arg0: i32) -> (i32, i32) {
    %c0_i32 = arith.constant 0 : i32
    %c0_i32_0 = arith.constant 0 : i32
    %c0_i32_1 = arith.constant 0 : i32
    return %c0_i32, %c0_i32_0 : i32, i32
  }
  func.func @transform_7(%arg0: i32) -> (i32, i32) {
    %c0_i32 = arith.constant 0 : i32
    %c0_i32_0 = arith.constant 0 : i32
    %c0_i32_1 = arith.constant 0 : i32
    return %c0_i32, %c0_i32_0 : i32, i32
  }
  func.func @transform_8(%arg0: i32) -> (i32, i32) {
    %c0_i32 = arith.constant 0 : i32
    %c0_i32_0 = arith.constant 0 : i32
    %c0_i32_1 = arith.constant 0 : i32
    return %c0_i32, %c0_i32_0 : i32, i32
  }
  func.func @transform_9(%arg0: i32) -> (i32, i32) {
    %c0_i32 = arith.constant 0 : i32
    %c0_i32_0 = arith.constant 0 : i32
    %c0_i32_1 = arith.constant 0 : i32
    return %c0_i32, %c0_i32_0 : i32, i32
  }
  func.func @transform_10(%arg0: i32) -> (i32, i32) {
    %c0_i32 = arith.constant 0 : i32
    %c0_i32_0 = arith.constant 0 : i32
    %c0_i32_1 = arith.constant 0 : i32
    return %c0_i32, %c0_i32_0 : i32, i32
  }
  func.func @transform_11(%arg0: i32) -> (i32, i32) {
    %c0_i32 = arith.constant 0 : i32
    %c0_i32_0 = arith.constant 0 : i32
    %c0_i32_1 = arith.constant 0 : i32
    return %c0_i32, %c0_i32_0 : i32, i32
  }
  func.func @transform_12(%arg0: i32) -> (i32, i32, i32) {
    %c0_i32 = arith.constant 0 : i32
    %c0_i32_0 = arith.constant 0 : i32
    %c0_i32_1 = arith.constant 0 : i32
    return %c0_i32, %arg0, %c0_i32_0 : i32, i32, i32
  }
  func.func @transform_13(%arg0: i32) -> (i32, i32, i32) {
    %c0_i32 = arith.constant 0 : i32
    %c0_i32_0 = arith.constant 0 : i32
    %c0_i32_1 = arith.constant 0 : i32
    return %c0_i32, %arg0, %c0_i32_0 : i32, i32, i32
  }
}

</mosaic_0001>

<llo_original>
// kernel: tpu_custom_call.1
$region0: #{tpu_custom_call.1}
  #allocation0 [shape = 'u32[]', space=smem, size = 0x4, offset = 0x4, fixed_abs, tag = 'smem constant byte address 0x4 - core index']
  #allocation1 [shape = 'u32[144,128]{1,0:T(1,128)}', space=vmem, size = 0x12000, scoped, tag = 'internal scratch']
  #allocation2 [shape = 'f32[88,16]{1,0:T(8,128)}', space=vmem, size = 0xb000, scoped, tag = 'scratch operand']
  %s0 = inlined_call_operand.vmem [shape: f32[8,8,16], index: 0, kind: input, shape index: {}]
  %s1 = inlined_call_operand.vmem [shape: f32[3,8,16], index: 1, kind: input, shape index: {}]
  %s2 = inlined_call_operand.vmem [shape: f32[16,32], index: 2, kind: input, shape index: {}]
  %s3 = inlined_call_operand.vmem [shape: f32[1,32], index: 3, kind: input, shape index: {}]
  %s4 = inlined_call_operand.vmem [shape: f32[32,16], index: 4, kind: input, shape index: {}]
  %s5 = inlined_call_operand.vmem [shape: f32[1,16], index: 5, kind: input, shape index: {}]
  %s6 = inlined_call_operand.vmem [shape: f32[64,32], index: 6, kind: input, shape index: {}]
  %s7 = inlined_call_operand.vmem [shape: f32[1,32], index: 7, kind: input, shape index: {}]
  %s8 = inlined_call_operand.vmem [shape: f32[32,32], index: 8, kind: input, shape index: {}]
  %s9 = inlined_call_operand.vmem [shape: f32[1,32], index: 9, kind: input, shape index: {}]
  %s10 = inlined_call_operand.vmem [shape: f32[32,8], index: 10, kind: input, shape index: {}]
  %s11 = inlined_call_operand.vmem [shape: f32[1,8], index: 11, kind: input, shape index: {}]
  %s12 = inlined_call_operand.hbm [shape: f32[8,8,8], index: 12, kind: output, shape index: {0}]
  %s13 = inlined_call_operand.hbm [shape: f32[3,8,16], index: 13, kind: output, shape index: {1}]
  %14 = xla_tuple %s12, %s13
  %s15 = sld [smem:[#allocation0]]
  $region66: #{tpu_custom_call.1} parent=0
    _
  %s17 = ssub.s32 1, %s15
  %s18 = scalar_select 0, %s17, %s15
  $region1: #{tpu_custom_call.1} parent=0
    #allocation3 [shape = 'u8[32768]{0}', space=vmem, size = 0x8000, scoped, tag = 'output window, operand 0, single buffered']
    #allocation4 [shape = 's32[1]{0}', space=sflag, size = 0x4, scoped, tag = 'scoped memory for tpu_custom_call.1']
    #allocation5 [shape = 'u8[12288]{0}', space=vmem, size = 0x3000, scoped, tag = 'output window, operand 1, single buffered']
    #allocation6 [shape = 's32[1]{0}', space=sflag, size = 0x4, scoped, tag = 'scoped memory for tpu_custom_call.1']
    %19 = vsyncpa [#allocation4], 0
    %20 = vsyncpa [#allocation6], 0
    // Predicated region
    $region2: #{tpu_custom_call.1} parent=1 // pred_check
      _
    $region3: #{tpu_custom_call.1} parent=1 // pred_check_branch
      %22 = sbr.rel (0) target = $region5
    $region4: #{tpu_custom_call.1} parent=1 // pred_region
      _
    $region5: #{tpu_custom_call.1} parent=1 // pred_fallthru
      _
    // Predicated region
    $region6: #{tpu_custom_call.1} parent=1 // pred_check
      _
    $region7: #{tpu_custom_call.1} parent=1 // pred_check_branch
      %24 = sbr.rel (0) target = $region9
    $region8: #{tpu_custom_call.1} parent=1 // pred_region
      _
    $region9: #{tpu_custom_call.1} parent=1 // pred_fallthru
      _
    // Predicated region
    $region10: #{tpu_custom_call.1} parent=1 // pred_check
      _
    $region11: #{tpu_custom_call.1} parent=1 // pred_check_branch
      %26 = sbr.rel (0) target = $region13
    $region12: #{tpu_custom_call.1} parent=1 // pred_region
      _
    $region13: #{tpu_custom_call.1} parent=1 // pred_fallthru
      _
    // Predicated region
    $region14: #{tpu_custom_call.1} parent=1 // pred_check
      _
    $region15: #{tpu_custom_call.1} parent=1 // pred_check_branch
      %28 = sbr.rel (0) target = $region17
    $region16: #{tpu_custom_call.1} parent=1 // pred_region
      _
    $region17: #{tpu_custom_call.1} parent=1 // pred_fallthru
      _
    // Predicated region
    $region18: #{tpu_custom_call.1} parent=1 // pred_check
      _
    $region19: #{tpu_custom_call.1} parent=1 // pred_check_branch
      %30 = sbr.rel (0) target = $region21
    $region20: #{tpu_custom_call.1} parent=1 // pred_region
      _
    $region21: #{tpu_custom_call.1} parent=1 // pred_fallthru
      _
    // Predicated region
    $region22: #{tpu_custom_call.1} parent=1 // pred_check
      _
    $region23: #{tpu_custom_call.1} parent=1 // pred_check_branch
      %32 = sbr.rel (0) target = $region25
    $region24: #{tpu_custom_call.1} parent=1 // pred_region
      _
    $region25: #{tpu_custom_call.1} parent=1 // pred_fallthru
      _
    // Predicated region
    $region26: #{tpu_custom_call.1} parent=1 // pred_check
      _
    $region27: #{tpu_custom_call.1} parent=1 // pred_check_branch
      %34 = sbr.rel (0) target = $region29
    $region28: #{tpu_custom_call.1} parent=1 // pred_region
      _
    $region29: #{tpu_custom_call.1} parent=1 // pred_fallthru
      _
    // Predicated region
    $region30: #{tpu_custom_call.1} parent=1 // pred_check
      _
    $region31: #{tpu_custom_call.1} parent=1 // pred_check_branch
      %36 = sbr.rel (0) target = $region33
    $region32: #{tpu_custom_call.1} parent=1 // pred_region
      _
    $region33: #{tpu_custom_call.1} parent=1 // pred_fallthru
      _
    // Predicated region
    $region34: #{tpu_custom_call.1} parent=1 // pred_check
      _
    $region35: #{tpu_custom_call.1} parent=1 // pred_check_branch
      %38 = sbr.rel (0) target = $region37
    $region36: #{tpu_custom_call.1} parent=1 // pred_region
      _
    $region37: #{tpu_custom_call.1} parent=1 // pred_fallthru
      _
    // Predicated region
    $region38: #{tpu_custom_call.1} parent=1 // pred_check
      _
    $region39: #{tpu_custom_call.1} parent=1 // pred_check_branch
      %40 = sbr.rel (0) target = $region41
    $region40: #{tpu_custom_call.1} parent=1 // pred_region
      _
    $region41: #{tpu_custom_call.1} parent=1 // pred_fallthru
      _
    // Predicated region
    $region42: #{tpu_custom_call.1} parent=1 // pred_check
      _
    $region43: #{tpu_custom_call.1} parent=1 // pred_check_branch
      %42 = sbr.rel (0) target = $region45
    $region44: #{tpu_custom_call.1} parent=1 // pred_region
      _
    $region45: #{tpu_custom_call.1} parent=1 // pred_fallthru
      _
    // Predicated region
    $region46: #{tpu_custom_call.1} parent=1 // pred_check
      _
    $region47: #{tpu_custom_call.1} parent=1 // pred_check_branch
      %44 = sbr.rel (0) target = $region49
    $region48: #{tpu_custom_call.1} parent=1 // pred_region
      _
    $region49: #{tpu_custom_call.1} parent=1 // pred_fallthru
      _
    %v45 = vld [vmem:[%s0] sm:$0xff]
    %v46 = vld [vmem:[%s0 + $0x8] sm:$0xff]
    %v47 = vld [vmem:[%s0 + $0x10] sm:$0xff]
    %v48 = vld [vmem:[%s0 + $0x18] sm:$0xff]
    %v49 = vld [vmem:[%s0 + $0x20] sm:$0xff]
    %v50 = vld [vmem:[%s0 + $0x28] sm:$0xff]
    %v51 = vld [vmem:[%s0 + $0x30] sm:$0xff]
    %v52 = vld [vmem:[%s0 + $0x38] sm:$0xff]
    %v53 = vld [vmem:[%s2] sm:$0xff]
    %v54 = vld [vmem:[%s2 + $0x8] sm:$0xff]
    %v55 = vld [vmem:[%s3] sm:$0x1]
    %v57 = vlaneseq
    %v58 = vshrl.u32 %v57, 7
    %v59 = vsub.s32 0, %v58
    %v60 = vrot.slane %v55, %v59
    %vm62 = vcmask 130048
    %v64 = vsel %vm62, %v45, 0
    %v67 = vsel %vm62, %v46, 0
    %v70 = vsel %vm62, %v47, 0
    %v73 = vsel %vm62, %v48, 0
    %v76 = vsel %vm62, %v49, 0
    %v79 = vsel %vm62, %v50, 0
    %v82 = vsel %vm62, %v51, 0
    %v85 = vsel %vm62, %v52, 0
    %87 = vmatprep.subr.mxu0 0.0
    %88 = vmatpush1.msra.mxu0 %v53
    %89 = vmatprep.subr.mxu0 0.0
    %90 = vmatpush1.msra.mxu0 %v54
    %91 = vmatprep.subr.mxu0 0.0
    %92 = vmatpush1.msra.mxu0 0.0
    %93 = vmatprep.subr.mxu0 0.0
    %94 = vmatpush1.msra.mxu0 0.0
    %95 = vmatprep.subr.mxu0 0.0
    %96 = vmatpush1.msra.mxu0 0.0
    %97 = vmatprep.subr.mxu0 0.0
    %98 = vmatpush1.msra.mxu0 0.0
    %99 = vmatprep.subr.mxu0 0.0
    %100 = vmatpush1.msra.mxu0 0.0
    %101 = vmatprep.subr.mxu0 0.0
    %102 = vmatpush1.msra.mxu0 0.0
    %103 = vmatprep.subr.mxu0 0.0
    %104 = vmatpush1.msra.mxu0 0.0
    %105 = vmatprep.subr.mxu0 0.0
    %106 = vmatpush1.msra.mxu0 0.0
    %107 = vmatprep.subr.mxu0 0.0
    %108 = vmatpush1.msra.mxu0 0.0
    %109 = vmatprep.subr.mxu0 0.0
    %110 = vmatpush1.msra.mxu0 0.0
    %111 = vmatprep.subr.mxu0 0.0
    %112 = vmatpush1.msra.mxu0 0.0
    %113 = vmatprep.subr.mxu0 0.0
    %114 = vmatpush1.msra.mxu0 0.0
    %115 = vmatprep.subr.mxu0 0.0
    %116 = vmatpush1.msra.mxu0 0.0
    %117 = vmatprep.subr.mxu0 0.0
    %118 = vmatpush1.msra.mxu0 0.0
    %119 = vmatprep.subr.mxu0 0.0
    %120 = vmatpush1.msra.mxu0 0.0
    %121 = vmatprep.subr.mxu0 0.0
    %122 = vmatpush1.msra.mxu0 0.0
    %123 = vmatprep.subr.mxu0 0.0
    %124 = vmatpush1.msra.mxu0 0.0
    %125 = vmatprep.subr.mxu0 0.0
    %126 = vmatpush1.msra.mxu0 0.0
    %127 = vmatprep.subr.mxu0 0.0
    %128 = vmatpush1.msra.mxu0 0.0
    %129 = vmatprep.subr.mxu0 0.0
    %130 = vmatpush1.msra.mxu0 0.0
    %131 = vmatprep.subr.mxu0 0.0
    %132 = vmatpush1.msra.mxu0 0.0
    %133 = vmatprep.subr.mxu0 0.0
    %134 = vmatpush1.msra.mxu0 0.0
    %135 = vmatprep.subr.mxu0 0.0
    %136 = vmatpush1.msra.mxu0 0.0
    %137 = vmatprep.subr.mxu0 0.0
    %138 = vmatpush1.msra.mxu0 0.0
    %139 = vmatprep.subr.mxu0 0.0
    %140 = vmatpush1.msra.mxu0 0.0
    %141 = vmatprep.subr.mxu0 0.0
    %142 = vmatpush1.msra.mxu0 0.0
    %143 = vmatprep.subr.mxu0 0.0
    %144 = vmatpush1.msra.mxu0 0.0
    %145 = vmatprep.subr.mxu0 0.0
    %146 = vmatpush1.msra.mxu0 0.0
    %147 = vmatprep.subr.mxu0 0.0
    %148 = vmatpush1.msra.mxu0 0.0
    %149 = vmatprep.subr.mxu0 0.0
    %150 = vmatpush1.msra.mxu0 0.0
    %151 = vmatprep.mubr.f32.mxu0 0.0
    %152 = vmatmul.mubr.f32.gmra.mrb[0].mxu0 %v64
    %v153 = vpop.f32.mrb[0].mxu0
    %v154 = vadd.f32 %v60, %v153
    %v155 = vpop.f32.mrb[0].mxu0
    %156 = vmatprep.mubr.f32.mxu0 0.0
    %157 = vmatmul.mubr.f32.gmra.mrb[0].mxu0 %v67
    %v158 = vpop.f32.mrb[0].mxu0
    %v159 = vadd.f32 %v60, %v158
    %v160 = vpop.f32.mrb[0].mxu0
    %161 = vmatprep.mubr.f32.mxu0 0.0
    %162 = vmatmul.mubr.f32.gmra.mrb[0].mxu0 %v70
    %v163 = vpop.f32.mrb[0].mxu0
    %v164 = vadd.f32 %v60, %v163
    %v165 = vpop.f32.mrb[0].mxu0
    %166 = vmatprep.mubr.f32.mxu0 0.0
    %167 = vmatmul.mubr.f32.gmra.mrb[0].mxu0 %v73
    %v168 = vpop.f32.mrb[0].mxu0
    %v169 = vadd.f32 %v60, %v168
    %v170 = vpop.f32.mrb[0].mxu0
    %171 = vmatprep.mubr.f32.mxu0 0.0
    %172 = vmatmul.mubr.f32.gmra.mrb[0].mxu0 %v76
    %v173 = vpop.f32.mrb[0].mxu0
    %v174 = vadd.f32 %v60, %v173
    %v175 = vpop.f32.mrb[0].mxu0
    %176 = vmatprep.mubr.f32.mxu0 0.0
    %177 = vmatmul.mubr.f32.gmra.mrb[0].mxu0 %v79
    %v178 = vpop.f32.mrb[0].mxu0
    %v179 = vadd.f32 %v60, %v178
    %v180 = vpop.f32.mrb[0].mxu0
    %181 = vmatprep.mubr.f32.mxu0 0.0
    %182 = vmatmul.mubr.f32.gmra.mrb[0].mxu0 %v82
    %v183 = vpop.f32.mrb[0].mxu0
    %v184 = vadd.f32 %v60, %v183
    %v185 = vpop.f32.mrb[0].mxu0
    %186 = vmatprep.mubr.f32.mxu0 0.0
    %187 = vmatmul.mubr.f32.gmra.mrb[0].mxu0 %v85
    %v188 = vpop.f32.mrb[0].mxu0
    %v189 = vadd.f32 %v60, %v188
    %v190 = vpop.f32.mrb[0].mxu0
    %191 = vdwg.mxu0
    %v192 = vmax.f32 %v154, 0.0
    %v193 = vmax.f32 %v159, 0.0
    %v194 = vmax.f32 %v164, 0.0
    %v195 = vmax.f32 %v169, 0.0
    %v196 = vmax.f32 %v174, 0.0
    %v197 = vmax.f32 %v179, 0.0
    %v198 = vmax.f32 %v184, 0.0
    %v199 = vmax.f32 %v189, 0.0
    %v200 = vld [vmem:[%s4] sm:$0xff]
    %v201 = vld [vmem:[%s4 + $0x8] sm:$0xff]
    %v202 = vld [vmem:[%s4 + $0x10] sm:$0xff]
    %v203 = vld [vmem:[%s4 + $0x18] sm:$0xff]
    %v204 = vld [vmem:[%s5] sm:$0x1]
    %v206 = vlaneseq
    %v207 = vshrl.u32 %v206, 7
    %v208 = vsub.s32 0, %v207
    %v209 = vrot.slane %v204, %v208
    %vm211 = vcmask 261120
    %v213 = vsel %vm211, %v192, 0
    %v216 = vsel %vm211, %v193, 0
    %v219 = vsel %vm211, %v194, 0
    %v222 = vsel %vm211, %v195, 0
    %v225 = vsel %vm211, %v196, 0
    %v228 = vsel %vm211, %v197, 0
    %v231 = vsel %vm211, %v198, 0
    %v234 = vsel %vm211, %v199, 0
    %236 = vmatprep.subr.mxu0 0.0
    %237 = vmatpush1.msra.mxu0 %v200
    %238 = vmatprep.subr.mxu0 0.0
    %239 = vmatpush1.msra.mxu0 %v201
    %240 = vmatprep.subr.mxu0 0.0
    %241 = vmatpush1.msra.mxu0 %v202
    %242 = vmatprep.subr.mxu0 0.0
    %243 = vmatpush1.msra.mxu0 %v203
    %244 = vmatprep.subr.mxu0 0.0
    %245 = vmatpush1.msra.mxu0 0.0
    %246 = vmatprep.subr.mxu0 0.0
    %247 = vmatpush1.msra.mxu0 0.0
    %248 = vmatprep.subr.mxu0 0.0
    %249 = vmatpush1.msra.mxu0 0.0
    %250 = vmatprep.subr.mxu0 0.0
    %251 = vmatpush1.msra.mxu0 0.0
    %252 = vmatprep.subr.mxu0 0.0
    %253 = vmatpush1.msra.mxu0 0.0
    %254 = vmatprep.subr.mxu0 0.0
    %255 = vmatpush1.msra.mxu0 0.0
    %256 = vmatprep.subr.mxu0 0.0
    %257 = vmatpush1.msra.mxu0 0.0
    %258 = vmatprep.subr.mxu0 0.0
    %259 = vmatpush1.msra.mxu0 0.0
    %260 = vmatprep.subr.mxu0 0.0
    %261 = vmatpush1.msra.mxu0 0.0
    %262 = vmatprep.subr.mxu0 0.0
    %263 = vmatpush1.msra.mxu0 0.0
    %264 = vmatprep.subr.mxu0 0.0
    %265 = vmatpush1.msra.mxu0 0.0
    %266 = vmatprep.subr.mxu0 0.0
    %267 = vmatpush1.msra.mxu0 0.0
    %268 = vmatprep.subr.mxu0 0.0
    %269 = vmatpush1.msra.mxu0 0.0
    %270 = vmatprep.subr.mxu0 0.0
    %271 = vmatpush1.msra.mxu0 0.0
    %272 = vmatprep.subr.mxu0 0.0
    %273 = vmatpush1.msra.mxu0 0.0
    %274 = vmatprep.subr.mxu0 0.0
    %275 = vmatpush1.msra.mxu0 0.0
    %276 = vmatprep.subr.mxu0 0.0
    %277 = vmatpush1.msra.mxu0 0.0
    %278 = vmatprep.subr.mxu0 0.0
    %279 = vmatpush1.msra.mxu0 0.0
    %280 = vmatprep.subr.mxu0 0.0
    %281 = vmatpush1.msra.mxu0 0.0
    %282 = vmatprep.subr.mxu0 0.0
    %283 = vmatpush1.msra.mxu0 0.0
    %284 = vmatprep.subr.mxu0 0.0
    %285 = vmatpush1.msra.mxu0 0.0
    %286 = vmatprep.subr.mxu0 0.0
    %287 = vmatpush1.msra.mxu0 0.0
    %288 = vmatprep.subr.mxu0 0.0
    %289 = vmatpush1.msra.mxu0 0.0
    %290 = vmatprep.subr.mxu0 0.0
    %291 = vmatpush1.msra.mxu0 0.0
    %292 = vmatprep.subr.mxu0 0.0
    %293 = vmatpush1.msra.mxu0 0.0
    %294 = vmatprep.subr.mxu0 0.0
    %295 = vmatpush1.msra.mxu0 0.0
    %296 = vmatprep.subr.mxu0 0.0
    %297 = vmatpush1.msra.mxu0 0.0
    %298 = vmatprep.subr.mxu0 0.0
    %299 = vmatpush1.msra.mxu0 0.0
    %300 = vmatprep.mubr.f32.mxu0 0.0
    %301 = vmatmul.mubr.f32.gmra.mrb[0].mxu0 %v213
    %v302 = vpop.f32.mrb[0].mxu0
    %v303 = vadd.f32 %v209, %v302
    %v304 = vpop.f32.mrb[0].mxu0
    %305 = vmatprep.mubr.f32.mxu0 0.0
    %306 = vmatmul.mubr.f32.gmra.mrb[0].mxu0 %v216
    %v307 = vpop.f32.mrb[0].mxu0
    %v308 = vadd.f32 %v209, %v307
    %v309 = vpop.f32.mrb[0].mxu0
    %310 = vmatprep.mubr.f32.mxu0 0.0
    %311 = vmatmul.mubr.f32.gmra.mrb[0].mxu0 %v219
    %v312 = vpop.f32.mrb[0].mxu0
    %v313 = vadd.f32 %v209, %v312
    %v314 = vpop.f32.mrb[0].mxu0
    %315 = vmatprep.mubr.f32.mxu0 0.0
    %316 = vmatmul.mubr.f32.gmra.mrb[0].mxu0 %v222
    %v317 = vpop.f32.mrb[0].mxu0
    %v318 = vadd.f32 %v209, %v317
    %v319 = vpop.f32.mrb[0].mxu0
    %320 = vmatprep.mubr.f32.mxu0 0.0
    %321 = vmatmul.mubr.f32.gmra.mrb[0].mxu0 %v225
    %v322 = vpop.f32.mrb[0].mxu0
    %v323 = vadd.f32 %v209, %v322
    %v324 = vpop.f32.mrb[0].mxu0
    %325 = vmatprep.mubr.f32.mxu0 0.0
    %326 = vmatmul.mubr.f32.gmra.mrb[0].mxu0 %v228
    %v327 = vpop.f32.mrb[0].mxu0
    %v328 = vadd.f32 %v209, %v327
    %v329 = vpop.f32.mrb[0].mxu0
    %330 = vmatprep.mubr.f32.mxu0 0.0
    %331 = vmatmul.mubr.f32.gmra.mrb[0].mxu0 %v231
    %v332 = vpop.f32.mrb[0].mxu0
    %v333 = vadd.f32 %v209, %v332
    %v334 = vpop.f32.mrb[0].mxu0
    %335 = vmatprep.mubr.f32.mxu0 0.0
    %336 = vmatmul.mubr.f32.gmra.mrb[0].mxu0 %v234
    %v337 = vpop.f32.mrb[0].mxu0
    %v338 = vadd.f32 %v209, %v337
    %v339 = vpop.f32.mrb[0].mxu0
    %340 = vdwg.mxu0
    %v341 = vmax.f32 %v303, 0.0
    %v342 = vmax.f32 %v308, 0.0
    %v343 = vmax.f32 %v313, 0.0
    %v344 = vmax.f32 %v318, 0.0
    %v345 = vmax.f32 %v323, 0.0
    %v346 = vmax.f32 %v328, 0.0
    %v347 = vmax.f32 %v333, 0.0
    %v348 = vmax.f32 %v338, 0.0
    %349 = vst.msk [vmem:[#allocation5] sm:$0xff] %vm62, %v346
    %350 = vst.msk [vmem:[#allocation5 + $0x8] sm:$0xff] %vm62, %v347
    %351 = vst.msk [vmem:[#allocation5 + $0x10] sm:$0xff] %vm62, %v348
    %v352 = vld [vmem:[%s1] sm:$0xff]
    %v353 = vld [vmem:[%s1 + $0x8] sm:$0xff]
    %v354 = vld [vmem:[%s1 + $0x10] sm:$0xff]
    %355 = vst.msk [vmem:[#allocation2] sm:$0xff] %vm62, %v352
    %356 = vst.msk [vmem:[#allocation2 + $0x8] sm:$0xff] %vm62, %v353
    %357 = vst.msk [vmem:[#allocation2 + $0x10] sm:$0xff] %vm62, %v354
    %358 = vst.msk [vmem:[#allocation2 + $0x18] sm:$0xff] %vm62, %v341
    %359 = vst.msk [vmem:[#allocation2 + $0x20] sm:$0xff] %vm62, %v342
    %360 = vst.msk [vmem:[#allocation2 + $0x28] sm:$0xff] %vm62, %v343
    %361 = vst.msk [vmem:[#allocation2 + $0x30] sm:$0xff] %vm62, %v344
    %362 = vst.msk [vmem:[#allocation2 + $0x38] sm:$0xff] %vm62, %v345
    %363 = vst.msk [vmem:[#allocation2 + $0x40] sm:$0xff] %vm62, %v346
    %364 = vst.msk [vmem:[#allocation2 + $0x48] sm:$0xff] %vm62, %v347
    %365 = vst.msk [vmem:[#allocation2 + $0x50] sm:$0xff] %vm62, %v348
    %v366 = vld [vmem:[#allocation2] sm:$0xff]
    %v367 = vld [vmem:[#allocation2 + $0x8] sm:$0xff]
    %v368 = vld [vmem:[#allocation2 + $0x10] sm:$0xff]
    %v369 = vld [vmem:[#allocation2 + $0x18] sm:$0xff]
    %v370 = vld [vmem:[#allocation2 + $0x20] sm:$0xff]
    %v371 = vld [vmem:[#allocation2 + $0x28] sm:$0xff]
    %v372 = vld [vmem:[#allocation2 + $0x30] sm:$0xff]
    %v373 = vld [vmem:[#allocation2 + $0x38] sm:$0xff]
    %v374 = vld [vmem:[#allocation2 + $0x40] sm:$0xff]
    %v375 = vld [vmem:[#allocation2 + $0x48] sm:$0xff]
    %v376 = vld [vmem:[#allocation2 + $0x50] sm:$0xff]
    %385 = vrot.lane.b32.xlu0 %v367, 16
    %v386 = vpop.permute.xlu0 %385
    %387 = vrot.lane.b32.xlu0 %v368, 16
    %v388 = vpop.permute.xlu0 %387
    %389 = vrot.lane.b32.xlu0 %v369, 16
    %v390 = vpop.permute.xlu0 %389
    %391 = vrot.lane.b32.xlu0 %v370, 16
    %v392 = vpop.permute.xlu0 %391
    %393 = vrot.lane.b32.xlu0 %v371, 16
    %v394 = vpop.permute.xlu0 %393
    %395 = vrot.lane.b32.xlu0 %v372, 16
    %v396 = vpop.permute.xlu0 %395
    %397 = vrot.lane.b32.xlu0 %v373, 16
    %v398 = vpop.permute.xlu0 %397
    %399 = vrot.lane.b32.xlu0 %v374, 16
    %v400 = vpop.permute.xlu0 %399
    %410 = vrot.lane.b32.xlu0 %v368, 32
    %v411 = vpop.permute.xlu0 %410
    %412 = vrot.lane.b32.xlu0 %v369, 32
    %v413 = vpop.permute.xlu0 %412
    %414 = vrot.lane.b32.xlu0 %v370, 32
    %v415 = vpop.permute.xlu0 %414
    %416 = vrot.lane.b32.xlu0 %v371, 32
    %v417 = vpop.permute.xlu0 %416
    %418 = vrot.lane.b32.xlu0 %v372, 32
    %v419 = vpop.permute.xlu0 %418
    %420 = vrot.lane.b32.xlu0 %v373, 32
    %v421 = vpop.permute.xlu0 %420
    %422 = vrot.lane.b32.xlu0 %v374, 32
    %v423 = vpop.permute.xlu0 %422
    %424 = vrot.lane.b32.xlu0 %v375, 32
    %v425 = vpop.permute.xlu0 %424
    %435 = vrot.lane.b32.xlu0 %v369, 48
    %v436 = vpop.permute.xlu0 %435
    %437 = vrot.lane.b32.xlu0 %v370, 48
    %v438 = vpop.permute.xlu0 %437
    %439 = vrot.lane.b32.xlu0 %v371, 48
    %v440 = vpop.permute.xlu0 %439
    %441 = vrot.lane.b32.xlu0 %v372, 48
    %v442 = vpop.permute.xlu0 %441
    %443 = vrot.lane.b32.xlu0 %v373, 48
    %v444 = vpop.permute.xlu0 %443
    %445 = vrot.lane.b32.xlu0 %v374, 48
    %v446 = vpop.permute.xlu0 %445
    %447 = vrot.lane.b32.xlu0 %v375, 48
    %v448 = vpop.permute.xlu0 %447
    %449 = vrot.lane.b32.xlu0 %v376, 48
    %v450 = vpop.permute.xlu0 %449
    %v459 = vsel %vm62, %v366, %v386
    %v460 = vsel %vm62, %v367, %v388
    %v461 = vsel %vm62, %v368, %v390
    %v462 = vsel %vm62, %v369, %v392
    %v463 = vsel %vm62, %v370, %v394
    %v464 = vsel %vm62, %v371, %v396
    %v465 = vsel %vm62, %v372, %v398
    %v466 = vsel %vm62, %v373, %v400
    %v467 = vsel %vm211, %v459, %v411
    %v468 = vsel %vm211, %v460, %v413
    %v469 = vsel %vm211, %v461, %v415
    %v470 = vsel %vm211, %v462, %v417
    %v471 = vsel %vm211, %v463, %v419
    %v472 = vsel %vm211, %v464, %v421
    %v473 = vsel %vm211, %v465, %v423
    %v474 = vsel %vm211, %v466, %v425
    %vm475 = vcmask 392192
    %v476 = vsel %vm475, %v467, %v436
    %v477 = vsel %vm475, %v468, %v438
    %v478 = vsel %vm475, %v469, %v440
    %v479 = vsel %vm475, %v470, %v442
    %v480 = vsel %vm475, %v471, %v444
    %v481 = vsel %vm475, %v472, %v446
    %v482 = vsel %vm475, %v473, %v448
    %v483 = vsel %vm475, %v474, %v450
    %v484 = vld [vmem:[%s6] sm:$0xff]
    %v485 = vld [vmem:[%s6 + $0x8] sm:$0xff]
    %v486 = vld [vmem:[%s6 + $0x10] sm:$0xff]
    %v487 = vld [vmem:[%s6 + $0x18] sm:$0xff]
    %v488 = vld [vmem:[%s6 + $0x20] sm:$0xff]
    %v489 = vld [vmem:[%s6 + $0x28] sm:$0xff]
    %v490 = vld [vmem:[%s6 + $0x30] sm:$0xff]
    %v491 = vld [vmem:[%s6 + $0x38] sm:$0xff]
    %v492 = vld [vmem:[%s7] sm:$0x1]
    %v494 = vlaneseq
    %v495 = vshrl.u32 %v494, 7
    %v496 = vsub.s32 0, %v495
    %v497 = vrot.slane %v492, %v496
    %vm499 = vcmask 523264
    %v501 = vsel %vm499, %v476, 0
    %v504 = vsel %vm499, %v477, 0
    %v507 = vsel %vm499, %v478, 0
    %v510 = vsel %vm499, %v479, 0
    %v513 = vsel %vm499, %v480, 0
    %v516 = vsel %vm499, %v481, 0
    %v519 = vsel %vm499, %v482, 0
    %v522 = vsel %vm499, %v483, 0
    %524 = vmatprep.subr.mxu0 0.0
    %525 = vmatpush1.msra.mxu0 %v484
    %526 = vmatprep.subr.mxu0 0.0
    %527 = vmatpush1.msra.mxu0 %v485
    %528 = vmatprep.subr.mxu0 0.0
    %529 = vmatpush1.msra.mxu0 %v486
    %530 = vmatprep.subr.mxu0 0.0
    %531 = vmatpush1.msra.mxu0 %v487
    %532 = vmatprep.subr.mxu0 0.0
    %533 = vmatpush1.msra.mxu0 %v488
    %534 = vmatprep.subr.mxu0 0.0
    %535 = vmatpush1.msra.mxu0 %v489
    %536 = vmatprep.subr.mxu0 0.0
    %537 = vmatpush1.msra.mxu0 %v490
    %538 = vmatprep.subr.mxu0 0.0
    %539 = vmatpush1.msra.mxu0 %v491
    %540 = vmatprep.subr.mxu0 0.0
    %541 = vmatpush1.msra.mxu0 0.0
    %542 = vmatprep.subr.mxu0 0.0
    %543 = vmatpush1.msra.mxu0 0.0
    %544 = vmatprep.subr.mxu0 0.0
    %545 = vmatpush1.msra.mxu0 0.0
    %546 = vmatprep.subr.mxu0 0.0
    %547 = vmatpush1.msra.mxu0 0.0
    %548 = vmatprep.subr.mxu0 0.0
    %549 = vmatpush1.msra.mxu0 0.0
    %550 = vmatprep.subr.mxu0 0.0
    %551 = vmatpush1.msra.mxu0 0.0
    %552 = vmatprep.subr.mxu0 0.0
    %553 = vmatpush1.msra.mxu0 0.0
    %554 = vmatprep.subr.mxu0 0.0
    %555 = vmatpush1.msra.mxu0 0.0
    %556 = vmatprep.subr.mxu0 0.0
    %557 = vmatpush1.msra.mxu0 0.0
    %558 = vmatprep.subr.mxu0 0.0
    %559 = vmatpush1.msra.mxu0 0.0
    %560 = vmatprep.subr.mxu0 0.0
    %561 = vmatpush1.msra.mxu0 0.0
    %562 = vmatprep.subr.mxu0 0.0
    %563 = vmatpush1.msra.mxu0 0.0
    %564 = vmatprep.subr.mxu0 0.0
    %565 = vmatpush1.msra.mxu0 0.0
    %566 = vmatprep.subr.mxu0 0.0
    %567 = vmatpush1.msra.mxu0 0.0
    %568 = vmatprep.subr.mxu0 0.0
    %569 = vmatpush1.msra.mxu0 0.0
    %570 = vmatprep.subr.mxu0 0.0
    %571 = vmatpush1.msra.mxu0 0.0
    %572 = vmatprep.subr.mxu0 0.0
    %573 = vmatpush1.msra.mxu0 0.0
    %574 = vmatprep.subr.mxu0 0.0
    %575 = vmatpush1.msra.mxu0 0.0
    %576 = vmatprep.subr.mxu0 0.0
    %577 = vmatpush1.msra.mxu0 0.0
    %578 = vmatprep.subr.mxu0 0.0
    %579 = vmatpush1.msra.mxu0 0.0
    %580 = vmatprep.subr.mxu0 0.0
    %581 = vmatpush1.msra.mxu0 0.0
    %582 = vmatprep.subr.mxu0 0.0
    %583 = vmatpush1.msra.mxu0 0.0
    %584 = vmatprep.subr.mxu0 0.0
    %585 = vmatpush1.msra.mxu0 0.0
    %586 = vmatprep.subr.mxu0 0.0
    %587 = vmatpush1.msra.mxu0 0.0
    %588 = vmatprep.mubr.f32.mxu0 0.0
    %589 = vmatmul.mubr.f32.gmra.mrb[0].mxu0 %v501
    %v590 = vpop.f32.mrb[0].mxu0
    %v591 = vadd.f32 %v497, %v590
    %v592 = vpop.f32.mrb[0].mxu0
    %593 = vmatprep.mubr.f32.mxu0 0.0
    %594 = vmatmul.mubr.f32.gmra.mrb[0].mxu0 %v504
    %v595 = vpop.f32.mrb[0].mxu0
    %v596 = vadd.f32 %v497, %v595
    %v597 = vpop.f32.mrb[0].mxu0
    %598 = vmatprep.mubr.f32.mxu0 0.0
    %599 = vmatmul.mubr.f32.gmra.mrb[0].mxu0 %v507
    %v600 = vpop.f32.mrb[0].mxu0
    %v601 = vadd.f32 %v497, %v600
    %v602 = vpop.f32.mrb[0].mxu0
    %603 = vmatprep.mubr.f32.mxu0 0.0
    %604 = vmatmul.mubr.f32.gmra.mrb[0].mxu0 %v510
    %v605 = vpop.f32.mrb[0].mxu0
    %v606 = vadd.f32 %v497, %v605
    %v607 = vpop.f32.mrb[0].mxu0
    %608 = vmatprep.mubr.f32.mxu0 0.0
    %609 = vmatmul.mubr.f32.gmra.mrb[0].mxu0 %v513
    %v610 = vpop.f32.mrb[0].mxu0
    %v611 = vadd.f32 %v497, %v610
    %v612 = vpop.f32.mrb[0].mxu0
    %613 = vmatprep.mubr.f32.mxu0 0.0
    %614 = vmatmul.mubr.f32.gmra.mrb[0].mxu0 %v516
    %v615 = vpop.f32.mrb[0].mxu0
    %v616 = vadd.f32 %v497, %v615
    %v617 = vpop.f32.mrb[0].mxu0
    %618 = vmatprep.mubr.f32.mxu0 0.0
    %619 = vmatmul.mubr.f32.gmra.mrb[0].mxu0 %v519
    %v620 = vpop.f32.mrb[0].mxu0
    %v621 = vadd.f32 %v497, %v620
    %v622 = vpop.f32.mrb[0].mxu0
    %623 = vmatprep.mubr.f32.mxu0 0.0
    %624 = vmatmul.mubr.f32.gmra.mrb[0].mxu0 %v522
    %v625 = vpop.f32.mrb[0].mxu0
    %v626 = vadd.f32 %v497, %v625
    %v627 = vpop.f32.mrb[0].mxu0
    %628 = vdwg.mxu0
    %v629 = vmax.f32 %v591, 0.0
    %v630 = vmax.f32 %v596, 0.0
    %v631 = vmax.f32 %v601, 0.0
    %v632 = vmax.f32 %v606, 0.0
    %v633 = vmax.f32 %v611, 0.0
    %v634 = vmax.f32 %v616, 0.0
    %v635 = vmax.f32 %v621, 0.0
    %v636 = vmax.f32 %v626, 0.0
    %v637 = vld [vmem:[%s8] sm:$0xff]
    %v638 = vld [vmem:[%s8 + $0x8] sm:$0xff]
    %v639 = vld [vmem:[%s8 + $0x10] sm:$0xff]
    %v640 = vld [vmem:[%s8 + $0x18] sm:$0xff]
    %v641 = vld [vmem:[%s9] sm:$0x1]
    %v643 = vlaneseq
    %v644 = vshrl.u32 %v643, 7
    %v645 = vsub.s32 0, %v644
    %v646 = vrot.slane %v641, %v645
    %v649 = vsel %vm211, %v629, 0
    %v652 = vsel %vm211, %v630, 0
    %v655 = vsel %vm211, %v631, 0
    %v658 = vsel %vm211, %v632, 0
    %v661 = vsel %vm211, %v633, 0
    %v664 = vsel %vm211, %v634, 0
    %v667 = vsel %vm211, %v635, 0
    %v670 = vsel %vm211, %v636, 0
    %672 = vmatprep.subr.mxu0 0.0
    %673 = vmatpush1.msra.mxu0 %v637
    %674 = vmatprep.subr.mxu0 0.0
    %675 = vmatpush1.msra.mxu0 %v638
    %676 = vmatprep.subr.mxu0 0.0
    %677 = vmatpush1.msra.mxu0 %v639
    %678 = vmatprep.subr.mxu0 0.0
    %679 = vmatpush1.msra.mxu0 %v640
    %680 = vmatprep.subr.mxu0 0.0
    %681 = vmatpush1.msra.mxu0 0.0
    %682 = vmatprep.subr.mxu0 0.0
    %683 = vmatpush1.msra.mxu0 0.0
    %684 = vmatprep.subr.mxu0 0.0
    %685 = vmatpush1.msra.mxu0 0.0
    %686 = vmatprep.subr.mxu0 0.0
    %687 = vmatpush1.msra.mxu0 0.0
    %688 = vmatprep.subr.mxu0 0.0
    %689 = vmatpush1.msra.mxu0 0.0
    %690 = vmatprep.subr.mxu0 0.0
    %691 = vmatpush1.msra.mxu0 0.0
    %692 = vmatprep.subr.mxu0 0.0
    %693 = vmatpush1.msra.mxu0 0.0
    %694 = vmatprep.subr.mxu0 0.0
    %695 = vmatpush1.msra.mxu0 0.0
    %696 = vmatprep.subr.mxu0 0.0
    %697 = vmatpush1.msra.mxu0 0.0
    %698 = vmatprep.subr.mxu0 0.0
    %699 = vmatpush1.msra.mxu0 0.0
    %700 = vmatprep.subr.mxu0 0.0
    %701 = vmatpush1.msra.mxu0 0.0
    %702 = vmatprep.subr.mxu0 0.0
    %703 = vmatpush1.msra.mxu0 0.0
    %704 = vmatprep.subr.mxu0 0.0
    %705 = vmatpush1.msra.mxu0 0.0
    %706 = vmatprep.subr.mxu0 0.0
    %707 = vmatpush1.msra.mxu0 0.0
    %708 = vmatprep.subr.mxu0 0.0
    %709 = vmatpush1.msra.mxu0 0.0
    %710 = vmatprep.subr.mxu0 0.0
    %711 = vmatpush1.msra.mxu0 0.0
    %712 = vmatprep.subr.mxu0 0.0
    %713 = vmatpush1.msra.mxu0 0.0
    %714 = vmatprep.subr.mxu0 0.0
    %715 = vmatpush1.msra.mxu0 0.0
    %716 = vmatprep.subr.mxu0 0.0
    %717 = vmatpush1.msra.mxu0 0.0
    %718 = vmatprep.subr.mxu0 0.0
    %719 = vmatpush1.msra.mxu0 0.0
    %720 = vmatprep.subr.mxu0 0.0
    %721 = vmatpush1.msra.mxu0 0.0
    %722 = vmatprep.subr.mxu0 0.0
    %723 = vmatpush1.msra.mxu0 0.0
    %724 = vmatprep.subr.mxu0 0.0
    %725 = vmatpush1.msra.mxu0 0.0
    %726 = vmatprep.subr.mxu0 0.0
    %727 = vmatpush1.msra.mxu0 0.0
    %728 = vmatprep.subr.mxu0 0.0
    %729 = vmatpush1.msra.mxu0 0.0
    %730 = vmatprep.subr.mxu0 0.0
    %731 = vmatpush1.msra.mxu0 0.0
    %732 = vmatprep.subr.mxu0 0.0
    %733 = vmatpush1.msra.mxu0 0.0
    %734 = vmatprep.subr.mxu0 0.0
    %735 = vmatpush1.msra.mxu0 0.0
    %736 = vmatprep.mubr.f32.mxu0 0.0
    %737 = vmatmul.mubr.f32.gmra.mrb[0].mxu0 %v649
    %v738 = vpop.f32.mrb[0].mxu0
    %v739 = vadd.f32 %v646, %v738
    %v740 = vpop.f32.mrb[0].mxu0
    %741 = vmatprep.mubr.f32.mxu0 0.0
    %742 = vmatmul.mubr.f32.gmra.mrb[0].mxu0 %v652
    %v743 = vpop.f32.mrb[0].mxu0
    %v744 = vadd.f32 %v646, %v743
    %v745 = vpop.f32.mrb[0].mxu0
    %746 = vmatprep.mubr.f32.mxu0 0.0
    %747 = vmatmul.mubr.f32.gmra.mrb[0].mxu0 %v655
    %v748 = vpop.f32.mrb[0].mxu0
    %v749 = vadd.f32 %v646, %v748
    %v750 = vpop.f32.mrb[0].mxu0
    %751 = vmatprep.mubr.f32.mxu0 0.0
    %752 = vmatmul.mubr.f32.gmra.mrb[0].mxu0 %v658
    %v753 = vpop.f32.mrb[0].mxu0
    %v754 = vadd.f32 %v646, %v753
    %v755 = vpop.f32.mrb[0].mxu0
    %756 = vmatprep.mubr.f32.mxu0 0.0
    %757 = vmatmul.mubr.f32.gmra.mrb[0].mxu0 %v661
    %v758 = vpop.f32.mrb[0].mxu0
    %v759 = vadd.f32 %v646, %v758
    %v760 = vpop.f32.mrb[0].mxu0
    %761 = vmatprep.mubr.f32.mxu0 0.0
    %762 = vmatmul.mubr.f32.gmra.mrb[0].mxu0 %v664
    %v763 = vpop.f32.mrb[0].mxu0
    %v764 = vadd.f32 %v646, %v763
    %v765 = vpop.f32.mrb[0].mxu0
    %766 = vmatprep.mubr.f32.mxu0 0.0
    %767 = vmatmul.mubr.f32.gmra.mrb[0].mxu0 %v667
    %v768 = vpop.f32.mrb[0].mxu0
    %v769 = vadd.f32 %v646, %v768
    %v770 = vpop.f32.mrb[0].mxu0
    %771 = vmatprep.mubr.f32.mxu0 0.0
    %772 = vmatmul.mubr.f32.gmra.mrb[0].mxu0 %v670
    %v773 = vpop.f32.mrb[0].mxu0
    %v774 = vadd.f32 %v646, %v773
    %v775 = vpop.f32.mrb[0].mxu0
    %776 = vdwg.mxu0
    %v777 = vmax.f32 %v739, 0.0
    %v778 = vmax.f32 %v744, 0.0
    %v779 = vmax.f32 %v749, 0.0
    %v780 = vmax.f32 %v754, 0.0
    %v781 = vmax.f32 %v759, 0.0
    %v782 = vmax.f32 %v764, 0.0
    %v783 = vmax.f32 %v769, 0.0
    %v784 = vmax.f32 %v774, 0.0
    %v785 = vld [vmem:[%s10] sm:$0xff]
    %v786 = vld [vmem:[%s10 + $0x8] sm:$0xff]
    %v787 = vld [vmem:[%s10 + $0x10] sm:$0xff]
    %v788 = vld [vmem:[%s10 + $0x18] sm:$0xff]
    %v789 = vld [vmem:[%s11] sm:$0x1]
    %v791 = vlaneseq
    %v792 = vshrl.u32 %v791, 7
    %v793 = vsub.s32 0, %v792
    %v794 = vrot.slane %v789, %v793
    %v797 = vsel %vm211, %v777, 0
    %v800 = vsel %vm211, %v778, 0
    %v803 = vsel %vm211, %v779, 0
    %v806 = vsel %vm211, %v780, 0
    %v809 = vsel %vm211, %v781, 0
    %v812 = vsel %vm211, %v782, 0
    %v815 = vsel %vm211, %v783, 0
    %v818 = vsel %vm211, %v784, 0
    %820 = vmatprep.subr.mxu0 0.0
    %821 = vmatpush1.msra.mxu0 %v785
    %822 = vmatprep.subr.mxu0 0.0
    %823 = vmatpush1.msra.mxu0 %v786
    %824 = vmatprep.subr.mxu0 0.0
    %825 = vmatpush1.msra.mxu0 %v787
    %826 = vmatprep.subr.mxu0 0.0
    %827 = vmatpush1.msra.mxu0 %v788
    %828 = vmatprep.subr.mxu0 0.0
    %829 = vmatpush1.msra.mxu0 0.0
    %830 = vmatprep.subr.mxu0 0.0
    %831 = vmatpush1.msra.mxu0 0.0
    %832 = vmatprep.subr.mxu0 0.0
    %833 = vmatpush1.msra.mxu0 0.0
    %834 = vmatprep.subr.mxu0 0.0
    %835 = vmatpush1.msra.mxu0 0.0
    %836 = vmatprep.subr.mxu0 0.0
    %837 = vmatpush1.msra.mxu0 0.0
    %838 = vmatprep.subr.mxu0 0.0
    %839 = vmatpush1.msra.mxu0 0.0
    %840 = vmatprep.subr.mxu0 0.0
    %841 = vmatpush1.msra.mxu0 0.0
    %842 = vmatprep.subr.mxu0 0.0
    %843 = vmatpush1.msra.mxu0 0.0
    %844 = vmatprep.subr.mxu0 0.0
    %845 = vmatpush1.msra.mxu0 0.0
    %846 = vmatprep.subr.mxu0 0.0
    %847 = vmatpush1.msra.mxu0 0.0
    %848 = vmatprep.subr.mxu0 0.0
    %849 = vmatpush1.msra.mxu0 0.0
    %850 = vmatprep.subr.mxu0 0.0
    %851 = vmatpush1.msra.mxu0 0.0
    %852 = vmatprep.subr.mxu0 0.0
    %853 = vmatpush1.msra.mxu0 0.0
    %854 = vmatprep.subr.mxu0 0.0
    %855 = vmatpush1.msra.mxu0 0.0
    %856 = vmatprep.subr.mxu0 0.0
    %857 = vmatpush1.msra.mxu0 0.0
    %858 = vmatprep.subr.mxu0 0.0
    %859 = vmatpush1.msra.mxu0 0.0
    %860 = vmatprep.subr.mxu0 0.0
    %861 = vmatpush1.msra.mxu0 0.0
    %862 = vmatprep.subr.mxu0 0.0
    %863 = vmatpush1.msra.mxu0 0.0
    %864 = vmatprep.subr.mxu0 0.0
    %865 = vmatpush1.msra.mxu0 0.0
    %866 = vmatprep.subr.mxu0 0.0
    %867 = vmatpush1.msra.mxu0 0.0
    %868 = vmatprep.subr.mxu0 0.0
    %869 = vmatpush1.msra.mxu0 0.0
    %870 = vmatprep.subr.mxu0 0.0
    %871 = vmatpush1.msra.mxu0 0.0
    %872 = vmatprep.subr.mxu0 0.0
    %873 = vmatpush1.msra.mxu0 0.0
    %874 = vmatprep.subr.mxu0 0.0
    %875 = vmatpush1.msra.mxu0 0.0
    %876 = vmatprep.subr.mxu0 0.0
    %877 = vmatpush1.msra.mxu0 0.0
    %878 = vmatprep.subr.mxu0 0.0
    %879 = vmatpush1.msra.mxu0 0.0
    %880 = vmatprep.subr.mxu0 0.0
    %881 = vmatpush1.msra.mxu0 0.0
    %882 = vmatprep.subr.mxu0 0.0
    %883 = vmatpush1.msra.mxu0 0.0
    %884 = vmatprep.mubr.f32.mxu0 0.0
    %885 = vmatmul.mubr.f32.gmra.mrb[0].mxu0 %v797
    %v886 = vpop.f32.mrb[0].mxu0
    %v887 = vadd.f32 %v794, %v886
    %v888 = vpop.f32.mrb[0].mxu0
    %889 = vmatprep.mubr.f32.mxu0 0.0
    %890 = vmatmul.mubr.f32.gmra.mrb[0].mxu0 %v800
    %v891 = vpop.f32.mrb[0].mxu0
    %v892 = vadd.f32 %v794, %v891
    %v893 = vpop.f32.mrb[0].mxu0
    %894 = vmatprep.mubr.f32.mxu0 0.0
    %895 = vmatmul.mubr.f32.gmra.mrb[0].mxu0 %v803
    %v896 = vpop.f32.mrb[0].mxu0
    %v897 = vadd.f32 %v794, %v896
    %v898 = vpop.f32.mrb[0].mxu0
    %899 = vmatprep.mubr.f32.mxu0 0.0
    %900 = vmatmul.mubr.f32.gmra.mrb[0].mxu0 %v806
    %v901 = vpop.f32.mrb[0].mxu0
    %v902 = vadd.f32 %v794, %v901
    %v903 = vpop.f32.mrb[0].mxu0
    %904 = vmatprep.mubr.f32.mxu0 0.0
    %905 = vmatmul.mubr.f32.gmra.mrb[0].mxu0 %v809
    %v906 = vpop.f32.mrb[0].mxu0
    %v907 = vadd.f32 %v794, %v906
    %v908 = vpop.f32.mrb[0].mxu0
    %909 = vmatprep.mubr.f32.mxu0 0.0
    %910 = vmatmul.mubr.f32.gmra.mrb[0].mxu0 %v812
    %v911 = vpop.f32.mrb[0].mxu0
    %v912 = vadd.f32 %v794, %v911
    %v913 = vpop.f32.mrb[0].mxu0
    %914 = vmatprep.mubr.f32.mxu0 0.0
    %915 = vmatmul.mubr.f32.gmra.mrb[0].mxu0 %v815
    %v916 = vpop.f32.mrb[0].mxu0
    %v917 = vadd.f32 %v794, %v916
    %v918 = vpop.f32.mrb[0].mxu0
    %919 = vmatprep.mubr.f32.mxu0 0.0
    %920 = vmatmul.mubr.f32.gmra.mrb[0].mxu0 %v818
    %v921 = vpop.f32.mrb[0].mxu0
    %v922 = vadd.f32 %v794, %v921
    %v923 = vpop.f32.mrb[0].mxu0
    %924 = vdwg.mxu0
    %vm925 = vcmask 64512
    %926 = vst.msk [vmem:[#allocation3] sm:$0xff] %vm925, %v887
    %927 = vst.msk [vmem:[#allocation3 + $0x8] sm:$0xff] %vm925, %v892
    %928 = vst.msk [vmem:[#allocation3 + $0x10] sm:$0xff] %vm925, %v897
    %929 = vst.msk [vmem:[#allocation3 + $0x18] sm:$0xff] %vm925, %v902
    %930 = vst.msk [vmem:[#allocation3 + $0x20] sm:$0xff] %vm925, %v907
    %931 = vst.msk [vmem:[#allocation3 + $0x28] sm:$0xff] %vm925, %v912
    %932 = vst.msk [vmem:[#allocation3 + $0x30] sm:$0xff] %vm925, %v917
    %933 = vst.msk [vmem:[#allocation3 + $0x38] sm:$0xff] %vm925, %v922
    // Predicated region
    $region50: #{tpu_custom_call.1} parent=1 // pred_check
      _
    $region51: #{tpu_custom_call.1} parent=1 // pred_check_branch
      %935 = sbr.rel (0) target = $region53
    $region52: #{tpu_custom_call.1} parent=1 // pred_region
      %s937 = ssub.s32 1024, 1024
      %938 = vsyncadd [#allocation4], %s937
      %s939 = sshll.u32 [#allocation3], 4
      %s940 = int_to_ptr.vmem [resolvable:$true] %s939
      %945 = dma.vmem_to_hbm [thread:$0]  %s940, 1024, %s12, [#allocation4], 128, 128, 8
    $region53: #{tpu_custom_call.1} parent=1 // pred_fallthru
      _
    // Predicated region
    $region54: #{tpu_custom_call.1} parent=1 // pred_check
      _
    $region55: #{tpu_custom_call.1} parent=1 // pred_check_branch
      %947 = sbr.rel (0) target = $region57
    $region56: #{tpu_custom_call.1} parent=1 // pred_region
      %s949 = ssub.s32 384, 384
      %950 = vsyncadd [#allocation6], %s949
      %s951 = sshll.u32 [#allocation5], 4
      %s952 = int_to_ptr.vmem [resolvable:$true] %s951
      %957 = dma.vmem_to_hbm [thread:$0]  %s952, 384, %s13, [#allocation6], 128, 128, 8
    $region57: #{tpu_custom_call.1} parent=1 // pred_fallthru
      _
    // Predicated region
    $region58: #{tpu_custom_call.1} parent=1 // pred_check
      _
    $region59: #{tpu_custom_call.1} parent=1 // pred_check_branch
      %959 = sbr.rel (0) target = $region61
    $region60: #{tpu_custom_call.1} parent=1 // pred_region
      %960 = dma.done [#allocation4], 1024
    $region61: #{tpu_custom_call.1} parent=1 // pred_fallthru
      _
    // Predicated region
    $region62: #{tpu_custom_call.1} parent=1 // pred_check
      _
    $region63: #{tpu_custom_call.1} parent=1 // pred_check_branch
      %962 = sbr.rel (0) target = $region65
    $region64: #{tpu_custom_call.1} parent=1 // pred_region
      %963 = dma.done [#allocation6], 384
    $region65: #{tpu_custom_call.1} parent=1 // pred_fallthru
      _
    %964 = vsyncpa [#allocation4], 1
    %965 = vsyncpa [#allocation6], 1

</llo_original>
